<compile_context>
chip_gen: v5e
topology: v5e:2x2
jax: 0.10.0
libtpu: 0.0.40
codegen_flags: <defaults>
</compile_context>

<pallas_src>
import jax
import jax.numpy as jnp
from jax.experimental import pallas as pl
from jax.experimental.pallas import tpu as pltpu

# ---- "args" of the original module, fixed deterministically in-script --------
LOSS_BOX_WEIGHT = 1.0      # args.loss_box_weight
LOSS_GUIDED = False        # args.loss_guided
NEGPOS_RATIO = 3.0         # args.loss_negpos_ratio
POSITIVE_WEIGHT = 1.0      # args.loss_positive_weight
FOCUSING = 0.0             # args.loss_focusing (focal gamma)
LABEL_SMOOTHING = 0.0      # args.label_smoothing
IOU_WEIGHTING = True       # args.loss_iou_weighting
# args.loss_box == 'smooth_l1', args.loss_mask == 'bce' assumed
# TODO(synk): exact MaskLoss / ElevationLoss variants (invalid-pixel masking, loss
# type selected by args.loss_mask) are not in the provided source; standard
# BCE-with-logits mean and smooth-L1 mean are implemented.


def _pick_lane_tile(n, target):
    """Largest multiple-of-128 divisor of n that is <= target, else n (full dim)."""
    if n % 128 != 0:
        return n
    t = max(128, min(n, (target // 128) * 128))
    while n % t != 0:
        t -= 128
    return t


# ----------------------------- MultiBox kernel --------------------------------
def _multibox_kernel(loc_ref, conf_ref, label_ref, ploc_ref, pos_ref, wiou_ref,
                     ce_ref, locl_ref):
    loc = loc_ref[0].astype(jnp.float32)      # (4, TP)
    ploc = ploc_ref[0].astype(jnp.float32)    # (4, TP)
    pos = pos_ref[0].astype(jnp.float32)      # (1, TP)
    wiou = wiou_ref[0].astype(jnp.float32)    # (1, TP)
    labels = label_ref[0]                     # (1, TP) int32
    conf = conf_ref[0].astype(jnp.float32)    # (C, TP)
    C = conf.shape[0]

    # Smooth-L1 localization loss on positive priors (optionally IoU-weighted).
    d = loc - ploc
    ad = jnp.abs(d)
    sl1 = jnp.where(ad < 1.0, 0.5 * d * d, ad - 0.5)            # (4, TP)
    per_prior_l = jnp.sum(sl1, axis=0, keepdims=True)           # (1, TP)
    if IOU_WEIGHTING:
        per_prior_l = per_prior_l * wiou
    per_prior_l = per_prior_l * pos                             # positives only

    # Per-prior softmax cross entropy (classes on sublanes, priors on lanes).
    m = jnp.max(conf, axis=0, keepdims=True)                    # (1, TP)
    z = conf - m
    lse = jnp.log(jnp.sum(jnp.exp(z), axis=0, keepdims=True))   # (1, TP)
    cls = jax.lax.broadcasted_iota(jnp.int32, conf.shape, 0)    # (C, TP)
    is_label = cls == labels                                    # (C, TP)
    if LABEL_SMOOTHING == 0.0 and FOCUSING == 0.0:
        # Direct CE: ce = -(logit_label - m - lse); skips materializing logp.
        logit_at_label = jnp.sum(jnp.where(is_label, conf, 0.0),
                                 axis=0, keepdims=True)
        ce = m + lse - logit_at_label                           # (1, TP)
    else:
        logp = z - lse
        onehot = is_label.astype(jnp.float32)
        tgt = onehot * (1.0 - LABEL_SMOOTHING) + LABEL_SMOOTHING / C
        ce = -jnp.sum(tgt * logp, axis=0, keepdims=True)
        if FOCUSING > 0.0:
            pt = jnp.sum(onehot * jnp.exp(logp), axis=0, keepdims=True)
            ce = ce * (1.0 - pt) ** FOCUSING

    ce_ref[0] = ce                       # lane-dense (1, TP) store
    locl_ref[0] = per_prior_l            # lane-dense (1, TP) store


def multibox_pallas(loc, conf, priors_label, priors_loc, priors_pos, weights_iou):
    """Returns (per-prior CE (B,P) f32, per-prior pos-masked smooth-L1 (B,P) f32)."""
    B, P, _ = loc.shape
    C = conf.shape[-1]

    # Priors-on-lanes layout (layout plumbing only; all math stays in the kernel).
    loc_t = jnp.transpose(loc, (0, 2, 1))                        # (B, 4, P)
    ploc_t = jnp.transpose(priors_loc, (0, 2, 1))                # (B, 4, P)
    conf_t = jnp.transpose(conf, (0, 2, 1))                      # (B, C, P)
    label_t = priors_label.reshape(B, 1, P).astype(jnp.int32)
    pos_t = priors_pos.reshape(B, 1, P).astype(jnp.float32)
    wiou_t = weights_iou.reshape(B, 1, P).astype(jnp.float32)

    tp = _pick_lane_tile(P, 2048)
    grid = (B, P // tp)

    in_specs = [
        pl.BlockSpec((1, 4, tp), lambda b, t: (b, 0, t)),
        pl.BlockSpec((1, C, tp), lambda b, t: (b, 0, t)),
        pl.BlockSpec((1, 1, tp), lambda b, t: (b, 0, t)),
        pl.BlockSpec((1, 4, tp), lambda b, t: (b, 0, t)),
        pl.BlockSpec((1, 1, tp), lambda b, t: (b, 0, t)),
        pl.BlockSpec((1, 1, tp), lambda b, t: (b, 0, t)),
    ]
    out_specs = (
        pl.BlockSpec((1, 1, tp), lambda b, t: (b, 0, t)),
        pl.BlockSpec((1, 1, tp), lambda b, t: (b, 0, t)),
    )
    ce, locl = pl.pallas_call(
        _multibox_kernel,
        out_shape=(jax.ShapeDtypeStruct((B, 1, P), jnp.float32),
                   jax.ShapeDtypeStruct((B, 1, P), jnp.float32)),
        grid=grid,
        in_specs=in_specs,
        out_specs=out_specs,
        compiler_params=pltpu.CompilerParams(
            dimension_semantics=("parallel", "parallel")),
    )(loc_t, conf_t, label_t, ploc_t, pos_t, wiou_t)
    return ce[:, 0, :], locl[:, 0, :]


# --------------------- Mask (BCE) / Elevation (smooth-L1) ---------------------
def _bce_sum_kernel(x_ref, y_ref, o_ref, acc_ref):
    @pl.when(pl.program_id(0) == 0)
    def _():
        acc_ref[...] = jnp.zeros_like(acc_ref)

    x = x_ref[...].astype(jnp.float32)
    y = y_ref[...].astype(jnp.float32)
    # Numerically-stable BCE with logits.  (log1p(exp(-|x|)) is a few ulps more
    # precise; the plain log form is kept for a simple, proven Mosaic lowering.)
    bce = jnp.maximum(x, 0.0) - x * y + jnp.log(1.0 + jnp.exp(-jnp.abs(x)))
    acc_ref[...] += jnp.sum(bce)

    @pl.when(pl.program_id(0) == pl.num_programs(0) - 1)
    def _():
        o_ref[...] = acc_ref[...]


def _smoothl1_sum_kernel(x_ref, y_ref, o_ref, acc_ref):
    @pl.when(pl.program_id(0) == 0)
    def _():
        acc_ref[...] = jnp.zeros_like(acc_ref)

    d = x_ref[...].astype(jnp.float32) - y_ref[...].astype(jnp.float32)
    ad = jnp.abs(d)
    l = jnp.where(ad < 1.0, 0.5 * d * d, ad - 0.5)
    acc_ref[...] += jnp.sum(l)

    @pl.when(pl.program_id(0) == pl.num_programs(0) - 1)
    def _():
        o_ref[...] = acc_ref[...]


def _tiled_mean(kernel_body, x, y, lane_tile=4096):
    """Mean of an elementwise loss over a (B, C=1, H, W) pair via a tiled,
    pipelined Pallas reduction over lane-dense (B, tile) blocks."""
    B = x.shape[0]
    xf = x.reshape(B, -1)
    yf = y.reshape(B, -1)
    n = xf.shape[1]
    t = _pick_lane_tile(n, lane_tile)
    s = pl.pallas_call(
        kernel_body,
        out_shape=jax.ShapeDtypeStruct((1, 1), jnp.float32),
        grid=(n // t,),
        in_specs=[pl.BlockSpec((B, t), lambda i: (0, i)),
                  pl.BlockSpec((B, t), lambda i: (0, i))],
        out_specs=pl.BlockSpec((1, 1), lambda i: (0, 0)),
        scratch_shapes=[pltpu.VMEM((1, 1), jnp.float32)],
        compiler_params=pltpu.CompilerParams(dimension_semantics=("arbitrary",)),
    )(xf, yf)
    return s[0, 0] / float(xf.size)


# ------------------------------ SSDLoss forward --------------------------------
def ssd_loss(priors, outputs, targets):
    # `priors` is only needed to encode box targets when priors_loc is None; the
    # pre-matched priors_loc fast path of the PyTorch module is implemented here.
    del priors
    loc, conf, mask, ele = outputs
    B, P, _ = loc.shape

    ce, locl = multibox_pallas(
        loc, conf,
        targets['priors_label'], targets['priors_loc'].astype(jnp.float32),
        targets['priors_pos'], targets['weights_iou'])

    pos = targets['priors_pos'].astype(jnp.float32)              # (B, P)
    npos_b = jnp.sum(pos, axis=1)                                # (B,)
    n_total = jnp.maximum(jnp.sum(npos_b), 1.0)

    loc_sum = jnp.sum(locl)                                      # positives only (masked in kernel)
    pos_ce_sum = jnp.sum(ce * pos) * POSITIVE_WEIGHT

    # Hard negative mining (per-row sort: no dense Pallas equivalent -> JAX glue).
    # Single descending value sort + k-th-value threshold replaces the double argsort.
    neg_score = jnp.where(pos > 0, 0.0, ce)                      # (B, P)
    num_neg = jnp.minimum(NEGPOS_RATIO * npos_b, float(P) - npos_b)
    k = num_neg.astype(jnp.int32)                                # (B,)
    sorted_desc = -jnp.sort(-neg_score, axis=1)                  # (B, P) descending
    idx = jnp.clip(k - 1, 0, P - 1)
    thresh = jnp.take_along_axis(sorted_desc, idx[:, None], axis=1)   # (B, 1)
    # NOTE: ties at the threshold may select slightly more negatives than the
    # rank-exact PyTorch version; guarded for k == 0 (no positives in the row).
    neg_mask = (neg_score >= thresh) & (pos <= 0) & (k[:, None] > 0)
    neg_sum = jnp.sum(ce * neg_mask.astype(jnp.float32))

    loss_l = loc_sum / n_total
    loss_c = (pos_ce_sum + neg_sum) / n_total

    if LOSS_GUIDED:
        # PyTorch uses .item() (host sync, no grad through r); stop_gradient mirrors that.
        r = jax.lax.stop_gradient(loss_l) / jax.lax.stop_gradient(loss_c)
        loss_c = loss_c * r

    loss_m = None
    if targets.get('masks', None) is not None:
        loss_m = _tiled_mean(_bce_sum_kernel, mask, targets['masks'])

    loss_e = None
    if targets.get('elevation', None) is not None:
        loss_e = _tiled_mean(_smoothl1_sum_kernel, ele, targets['elevation'])

    loss_l = loss_l * LOSS_BOX_WEIGHT
    losses = {'Loc': loss_l, 'Conf': loss_c}
    if loss_m is not None:
        losses['Mask'] = loss_m
    if loss_e is not None:
        losses['Elev'] = loss_e
    return losses


if __name__ == "__main__":
    key = jax.random.PRNGKey(0)
    B, P, C, H, W = 2, 128, 8, 16, 16
    ks = jax.random.split(key, 10)

    priors = jax.random.uniform(ks[0], (P, 4), jnp.float32)
    # network outputs
    loc = jax.random.normal(ks[1], (B, P, 4), jnp.float32)
    conf = jax.random.normal(ks[2], (B, P, C), jnp.float32)
    mask = jax.random.normal(ks[3], (B, 1, H, W), jnp.float32)      # NCHW
    ele = jax.random.normal(ks[4], (B, 1, H, W), jnp.float32)       # NCHW
    outputs = (loc, conf, mask, ele)

    # pre-matched targets
    priors_label = jax.random.randint(ks[5], (B, P), 0, C)
    priors_pos = (priors_label > 0).astype(jnp.float32)
    priors_loc = jax.random.normal(ks[6], (B, P, 4), jnp.float32)
    weights_iou = jax.random.uniform(ks[7], (B, P), jnp.float32, 0.5, 1.0)
    masks_t = (jax.random.uniform(ks[8], (B, 1, H, W)) > 0.5).astype(jnp.float32)
    elevation_t = jax.random.normal(ks[9], (B, 1, H, W), jnp.float32)

    targets = dict(masks=masks_t, elevation=elevation_t,
                   priors_label=priors_label, priors_loc=priors_loc,
                   priors_pos=priors_pos, weights_iou=weights_iou)

    losses = ssd_loss(priors, outputs, targets)
    losses = jax.tree_util.tree_map(jax.block_until_ready, losses)
    print("KERNEL_OK")
</pallas_src>

<mosaic_0001>
module attributes {stable_mosaic.version = 11 : i64} {
  func.func @_multibox_kernel(%arg0: i32, %arg1: i32, %arg2: memref<1x4x128xf32, #tpu.memory_space<vmem>>, %arg3: memref<1x8x128xf32, #tpu.memory_space<vmem>>, %arg4: memref<1x1x128xi32, #tpu.memory_space<vmem>>, %arg5: memref<1x4x128xf32, #tpu.memory_space<vmem>>, %arg6: memref<1x1x128xf32, #tpu.memory_space<vmem>>, %arg7: memref<1x1x128xf32, #tpu.memory_space<vmem>>, %arg8: memref<1x1x128xf32, #tpu.memory_space<vmem>>, %arg9: memref<1x1x128xf32, #tpu.memory_space<vmem>>) attributes {dimension_semantics = [#tpu.dimension_semantics<parallel>, #tpu.dimension_semantics<parallel>], iteration_bounds = array<i64: 2, 1>, scalar_prefetch = 0 : i64, scratch_operands = 0 : i64, tpu.core_type = #tpu.core_type<tc>, window_params = [{transform_indices = @transform_0, window_bounds = array<i64: 1, 4, 128>}, {transform_indices = @transform_1, window_bounds = array<i64: 1, 8, 128>}, {transform_indices = @transform_2, window_bounds = array<i64: 1, 1, 128>}, {transform_indices = @transform_3, window_bounds = array<i64: 1, 4, 128>}, {transform_indices = @transform_4, window_bounds = array<i64: 1, 1, 128>}, {transform_indices = @transform_5, window_bounds = array<i64: 1, 1, 128>}, {transform_indices = @transform_6, window_bounds = array<i64: 1, 1, 128>}, {transform_indices = @transform_7, window_bounds = array<i64: 1, 1, 128>}]} {
    %c0 = arith.constant 0 : index
    %c0_0 = arith.constant 0 : index
    %c0_1 = arith.constant 0 : index
    %0 = vector.load %arg2[%c0, %c0_0, %c0_1] : memref<1x4x128xf32, #tpu.memory_space<vmem>>, vector<1x4x128xf32>
    %1 = vector.shape_cast %0 : vector<1x4x128xf32> to vector<4x128xf32>
    %c0_2 = arith.constant 0 : index
    %c0_3 = arith.constant 0 : index
    %c0_4 = arith.constant 0 : index
    %2 = vector.load %arg5[%c0_2, %c0_3, %c0_4] : memref<1x4x128xf32, #tpu.memory_space<vmem>>, vector<1x4x128xf32>
    %3 = vector.shape_cast %2 : vector<1x4x128xf32> to vector<4x128xf32>
    %c0_5 = arith.constant 0 : index
    %c0_6 = arith.constant 0 : index
    %c0_7 = arith.constant 0 : index
    %4 = vector.load %arg6[%c0_5, %c0_6, %c0_7] : memref<1x1x128xf32, #tpu.memory_space<vmem>>, vector<1x1x128xf32>
    %5 = vector.shape_cast %4 : vector<1x1x128xf32> to vector<1x128xf32>
    %c0_8 = arith.constant 0 : index
    %c0_9 = arith.constant 0 : index
    %c0_10 = arith.constant 0 : index
    %6 = vector.load %arg7[%c0_8, %c0_9, %c0_10] : memref<1x1x128xf32, #tpu.memory_space<vmem>>, vector<1x1x128xf32>
    %7 = vector.shape_cast %6 : vector<1x1x128xf32> to vector<1x128xf32>
    %c0_11 = arith.constant 0 : index
    %c0_12 = arith.constant 0 : index
    %c0_13 = arith.constant 0 : index
    %8 = vector.load %arg4[%c0_11, %c0_12, %c0_13] : memref<1x1x128xi32, #tpu.memory_space<vmem>>, vector<1x1x128xi32>
    %9 = vector.shape_cast %8 : vector<1x1x128xi32> to vector<1x128xi32>
    %c0_14 = arith.constant 0 : index
    %c0_15 = arith.constant 0 : index
    %c0_16 = arith.constant 0 : index
    %10 = vector.load %arg3[%c0_14, %c0_15, %c0_16] : memref<1x8x128xf32, #tpu.memory_space<vmem>>, vector<1x8x128xf32>
    %11 = vector.shape_cast %10 : vector<1x8x128xf32> to vector<8x128xf32>
    %12 = arith.subf %1, %3 : vector<4x128xf32>
    %13 = math.absf %12 : vector<4x128xf32>
    %cst = arith.constant 1.000000e+00 : f32
    %14 = vector.broadcast %cst : f32 to vector<4x128xf32>
    %15 = arith.cmpf olt, %13, %14 : vector<4x128xf32>
    %cst_17 = arith.constant 5.000000e-01 : f32
    %16 = vector.broadcast %cst_17 : f32 to vector<4x128xf32>
    %17 = arith.mulf %16, %12 : vector<4x128xf32>
    %18 = arith.mulf %17, %12 : vector<4x128xf32>
    %cst_18 = arith.constant 5.000000e-01 : f32
    %19 = vector.broadcast %cst_18 : f32 to vector<4x128xf32>
    %20 = arith.subf %13, %19 : vector<4x128xf32>
    %21 = arith.select %15, %18, %20 : vector<4x128xi1>, vector<4x128xf32>
    %cst_19 = arith.constant dense<0.000000e+00> : vector<128xf32>
    %22 = vector.multi_reduction <add>, %21, %cst_19 [0] : vector<4x128xf32> to vector<128xf32>
    %23 = vector.shape_cast %22 : vector<128xf32> to vector<1x128xf32>
    %24 = arith.mulf %23, %7 : vector<1x128xf32>
    %25 = arith.mulf %24, %5 : vector<1x128xf32>
    %cst_20 = arith.constant dense<0xFF800000> : vector<128xf32>
    %26 = vector.multi_reduction <maximumf>, %11, %cst_20 [0] : vector<8x128xf32> to vector<128xf32>
    %27 = vector.shape_cast %26 : vector<128xf32> to vector<1x128xf32>
    %28 = vector.broadcast %27 : vector<1x128xf32> to vector<8x128xf32>
    %29 = arith.subf %11, %28 : vector<8x128xf32>
    %30 = math.exp %29 : vector<8x128xf32>
    %cst_21 = arith.constant dense<0.000000e+00> : vector<128xf32>
    %31 = vector.multi_reduction <add>, %30, %cst_21 [0] : vector<8x128xf32> to vector<128xf32>
    %32 = vector.shape_cast %31 : vector<128xf32> to vector<1x128xf32>
    %33 = math.log %32 : vector<1x128xf32>
    %34 = tpu.iota {dimensions = array<i32: 0>} : vector<8x128xi32>
    %35 = vector.broadcast %9 : vector<1x128xi32> to vector<8x128xi32>
    %36 = arith.cmpi eq, %34, %35 : vector<8x128xi32>
    %cst_22 = arith.constant 0.000000e+00 : f32
    %37 = vector.broadcast %cst_22 : f32 to vector<8x128xf32>
    %38 = arith.select %36, %11, %37 : vector<8x128xi1>, vector<8x128xf32>
    %cst_23 = arith.constant dense<0.000000e+00> : vector<128xf32>
    %39 = vector.multi_reduction <add>, %38, %cst_23 [0] : vector<8x128xf32> to vector<128xf32>
    %40 = vector.shape_cast %39 : vector<128xf32> to vector<1x128xf32>
    %41 = arith.addf %27, %33 : vector<1x128xf32>
    %42 = arith.subf %41, %40 : vector<1x128xf32>
    %c0_24 = arith.constant 0 : index
    %c0_25 = arith.constant 0 : index
    %c0_26 = arith.constant 0 : index
    %43 = vector.load %arg8[%c0_24, %c0_25, %c0_26] : memref<1x1x128xf32, #tpu.memory_space<vmem>>, vector<1x1x128xf32>
    %44 = vector.shape_cast %43 : vector<1x1x128xf32> to vector<1x128xf32>
    %45 = vector.shape_cast %42 : vector<1x128xf32> to vector<1x1x128xf32>
    tpu.vector_store %arg8[%c0_24, %c0_25, %c0_26], %45 {strides = array<i32>} : memref<1x1x128xf32, #tpu.memory_space<vmem>>, vector<1x1x128xf32>,
    %c0_27 = arith.constant 0 : index
    %c0_28 = arith.constant 0 : index
    %c0_29 = arith.constant 0 : index
    %46 = vector.load %arg9[%c0_27, %c0_28, %c0_29] : memref<1x1x128xf32, #tpu.memory_space<vmem>>, vector<1x1x128xf32>
    %47 = vector.shape_cast %46 : vector<1x1x128xf32> to vector<1x128xf32>
    %48 = vector.shape_cast %25 : vector<1x128xf32> to vector<1x1x128xf32>
    tpu.vector_store %arg9[%c0_27, %c0_28, %c0_29], %48 {strides = array<i32>} : memref<1x1x128xf32, #tpu.memory_space<vmem>>, vector<1x1x128xf32>,
    return
  }
  func.func @transform_0(%arg0: i32, %arg1: i32) -> (i32, i32, i32) {
    %c0_i32 = arith.constant 0 : i32
    %c0_i32_0 = arith.constant 0 : i32
    return %arg0, %c0_i32, %arg1 : i32, i32, i32
  }
  func.func @transform_1(%arg0: i32, %arg1: i32) -> (i32, i32, i32) {
    %c0_i32 = arith.constant 0 : i32
    %c0_i32_0 = arith.constant 0 : i32
    return %arg0, %c0_i32, %arg1 : i32, i32, i32
  }
  func.func @transform_2(%arg0: i32, %arg1: i32) -> (i32, i32, i32) {
    %c0_i32 = arith.constant 0 : i32
    %c0_i32_0 = arith.constant 0 : i32
    return %arg0, %c0_i32, %arg1 : i32, i32, i32
  }
  func.func @transform_3(%arg0: i32, %arg1: i32) -> (i32, i32, i32) {
    %c0_i32 = arith.constant 0 : i32
    %c0_i32_0 = arith.constant 0 : i32
    return %arg0, %c0_i32, %arg1 : i32, i32, i32
  }
  func.func @transform_4(%arg0: i32, %arg1: i32) -> (i32, i32, i32) {
    %c0_i32 = arith.constant 0 : i32
    %c0_i32_0 = arith.constant 0 : i32
    return %arg0, %c0_i32, %arg1 : i32, i32, i32
  }
  func.func @transform_5(%arg0: i32, %arg1: i32) -> (i32, i32, i32) {
    %c0_i32 = arith.constant 0 : i32
    %c0_i32_0 = arith.constant 0 : i32
    return %arg0, %c0_i32, %arg1 : i32, i32, i32
  }
  func.func @transform_6(%arg0: i32, %arg1: i32) -> (i32, i32, i32) {
    %c0_i32 = arith.constant 0 : i32
    %c0_i32_0 = arith.constant 0 : i32
    return %arg0, %c0_i32, %arg1 : i32, i32, i32
  }
  func.func @transform_7(%arg0: i32, %arg1: i32) -> (i32, i32, i32) {
    %c0_i32 = arith.constant 0 : i32
    %c0_i32_0 = arith.constant 0 : i32
    return %arg0, %c0_i32, %arg1 : i32, i32, i32
  }
}

</mosaic_0001>

<llo_original>
// kernel: tpu_custom_call.1
$region0: #{tpu_custom_call.1}
  #allocation0 [shape = 'u32[]', space=smem, size = 0x4, offset = 0x4, fixed_abs, tag = 'smem constant byte address 0x4 - core index']
  #allocation1 [shape = 'u32[72,128]{1,0:T(1,128)}', space=vmem, size = 0x9000, scoped, tag = 'internal scratch']
  %s0 = inlined_call_operand.hbm [shape: f32[2,4,128], index: 0, kind: input, shape index: {}]
  %s1 = inlined_call_operand.hbm [shape: f32[2,8,128], index: 1, kind: input, shape index: {}]
  %s2 = inlined_call_operand.hbm [shape: s32[2,1,128], index: 2, kind: input, shape index: {}]
  %s3 = inlined_call_operand.hbm [shape: f32[2,4,128], index: 3, kind: input, shape index: {}]
  %s4 = inlined_call_operand.vmem [shape: f32[2,1,128], index: 4, kind: input, shape index: {}]
  %s5 = inlined_call_operand.vmem [shape: f32[2,1,128], index: 5, kind: input, shape index: {}]
  %s6 = inlined_call_operand.hbm [shape: f32[2,1,128], index: 6, kind: output, shape index: {0}]
  %s7 = inlined_call_operand.hbm [shape: f32[2,1,128], index: 7, kind: output, shape index: {1}]
  %8 = xla_tuple %s6, %s7
  %s9 = sld [smem:[#allocation0]]
  $region81: #{tpu_custom_call.1} parent=0
    _
  %s11 = ssub.s32 1, %s9
  %s12 = scalar_select 0, %s11, %s9
  $region1: #{tpu_custom_call.1} parent=0
    #allocation2 [shape = 'u8[4096]{0}', space=vmem, size = 0x1000, scoped, tag = 'input window, operand 0']
    #allocation3 [shape = 's32[2]{0}', space=sflag, size = 0x8, scoped, tag = 'scoped memory for tpu_custom_call.1']
    #allocation4 [shape = 's32[2]{0}', space=sflag, size = 0x8, scoped, tag = 'scoped memory for tpu_custom_call.1']
    #allocation5 [shape = 'u8[8192]{0}', space=vmem, size = 0x2000, scoped, tag = 'input window, operand 1']
    #allocation6 [shape = 's32[2]{0}', space=sflag, size = 0x8, scoped, tag = 'scoped memory for tpu_custom_call.1']
    #allocation7 [shape = 'u8[1024]{0}', space=vmem, size = 0x400, scoped, tag = 'input window, operand 2']
    #allocation8 [shape = 'u8[4096]{0}', space=vmem, size = 0x1000, scoped, tag = 'input window, operand 3']
    #allocation9 [shape = 's32[2]{0}', space=sflag, size = 0x8, scoped, tag = 'scoped memory for tpu_custom_call.1']
    #allocation10 [shape = 'u8[1024]{0}', space=vmem, size = 0x400, scoped, tag = 'output window, operand 0']
    #allocation11 [shape = 'u8[1024]{0}', space=vmem, size = 0x400, scoped, tag = 'output window, operand 1']
    #allocation12 [shape = 's32[2]{0}', space=sflag, size = 0x8, scoped, tag = 'scoped memory for tpu_custom_call.1']
    %13 = vsyncpa [#allocation3], 0
    %s14 = scalar_lea.sflag [#allocation3], 1
    %15 = vsyncpa %s14, 0
    %16 = vsyncpa [#allocation6], 0
    %s17 = scalar_lea.sflag [#allocation6], 1
    %18 = vsyncpa %s17, 0
    %19 = vsyncpa [#allocation9], 0
    %s20 = scalar_lea.sflag [#allocation9], 1
    %21 = vsyncpa %s20, 0
    %22 = vsyncpa [#allocation4], 0
    %s23 = scalar_lea.sflag [#allocation4], 1
    %24 = vsyncpa %s23, 0
    %25 = vsyncpa [#allocation12], 0
    %s26 = scalar_lea.sflag [#allocation12], 1
    %27 = vsyncpa %s26, 0
    loop: start=0, step=1, limit=4
    $region2: #{tpu_custom_call.1} parent=1 // loop_pre_header
      _
    $region3: #{tpu_custom_call.1} parent=1 // loop_header
      %s29 = sphi 0, %s33
      %p30 = scmp.ge.s32.totalorder %s29, 4
      %s36 = sphi 0, %s48
      %s37 = sphi 0, %s44
      %s38 = sphi 0, %s36
      %s39 = sphi 0, %s37
      %s40 = sphi 0, %s38
      %s41 = sphi 0, %s39
      %s53 = sphi 0, %s55
      %s56 = sphi 0, %s53
      %s57 = sphi 0, %s56
      %s73 = sphi 0, %s57
      %s81 = sphi 0, %s83
      %s84 = sphi 0, %s81
      %s85 = sphi 0, %s84
      %s101 = sphi 0, %s85
      %s109 = sphi 0, %s111
      %s112 = sphi 0, %s109
      %s113 = sphi 0, %s112
      %s129 = sphi 0, %s113
      %s137 = sphi 0, %s139
      %s140 = sphi 0, %s137
      %s141 = sphi 0, %s140
      %s157 = sphi 0, %s141
      %s165 = sphi 0, %s167
      %s168 = sphi 0, %s165
      %s169 = sphi 0, %s168
      %s185 = sphi 0, %s169
      %s193 = sphi 0, %s195
      %s196 = sphi 0, %s193
      %s197 = sphi 0, %s196
      %s213 = sphi 0, %s197
      %s221 = sphi 0, %s223
      %s224 = sphi 0, %s221
      %s225 = sphi 0, %s224
      %s241 = sphi 0, %s225
      %s249 = sphi 0, %s251
      %s252 = sphi 0, %s249
      %s253 = sphi 0, %s252
      %s269 = sphi 0, %s253
    $region4: #{tpu_custom_call.1} parent=1 // loop_header_branch
      %32 = sbr.rel (%p30) target = $region8
    $region5: #{tpu_custom_call.1} parent=1 // loop_body
      %s34 = ssub.s32 %s29, 1
      %s35 = ssub.s32 %s29, 2
      %s42 = sadd.s32 1, %s37
      %p43 = scmp.ge.s32.totalorder %s42, 1
      %s44 = scalar_select %p43, 0, %s42
      %s45 = sadd.s32 1, %s36
      %s46 = scalar_select %p43, %s45, %s36
      %p47 = scmp.ge.s32.totalorder %s46, 2
      %s48 = scalar_select %p47, 0, %s46
      %s49 = ssub.s32 %s36, %s48
      %s50 = ssub.s32 %s37, %s44
      %s51 = sor.u32 %s49, %s50
      %p52 = scmp.eq.s32.totalorder %s51, 0
      %s54 = sadd.s32 %s53, 1
      %s55 = scalar_select %p52, %s53, %s54
      %p58 = pneg %p52
      %p59 = scmp.eq.s32.totalorder %s29, 1
      %p60 = por %p58, %p59
      %p61 = scmp.ne.s32.totalorder %s53, %s56
      %p62 = scmp.eq.s32.totalorder %s29, 0
      %p63 = por %p61, %p62
      %p64 = scmp.ne.s32.totalorder %s53, %s56
      %p65 = scmp.eq.s32.totalorder %s34, 1
      %p66 = por %p64, %p65
      %p67 = scmp.ne.s32.totalorder %s56, %s57
      %p68 = scmp.eq.s32.totalorder %s34, 0
      %p69 = por %p67, %p68
      %p70 = scmp.ne.s32.totalorder %s56, %s57
      %p71 = scmp.eq.s32.totalorder %s35, 1
      %p72 = por %p70, %p71
      %p74 = scmp.ne.s32.totalorder %s57, %s73
      %p75 = scmp.eq.s32.totalorder %s35, 0
      %p76 = por %p74, %p75
      %s77 = ssub.s32 %s36, %s48
      %s78 = ssub.s32 %s37, %s44
      %s79 = sor.u32 %s77, %s78
      %p80 = scmp.eq.s32.totalorder %s79, 0
      %s82 = sadd.s32 %s81, 1
      %s83 = scalar_select %p80, %s81, %s82
      %p86 = pneg %p80
      %p87 = scmp.eq.s32.totalorder %s29, 1
      %p88 = por %p86, %p87
      %p89 = scmp.ne.s32.totalorder %s81, %s84
      %p90 = scmp.eq.s32.totalorder %s29, 0
      %p91 = por %p89, %p90
      %p92 = scmp.ne.s32.totalorder %s81, %s84
      %p93 = scmp.eq.s32.totalorder %s34, 1
      %p94 = por %p92, %p93
      %p95 = scmp.ne.s32.totalorder %s84, %s85
      %p96 = scmp.eq.s32.totalorder %s34, 0
      %p97 = por %p95, %p96
      %p98 = scmp.ne.s32.totalorder %s84, %s85
      %p99 = scmp.eq.s32.totalorder %s35, 1
      %p100 = por %p98, %p99
      %p102 = scmp.ne.s32.totalorder %s85, %s101
      %p103 = scmp.eq.s32.totalorder %s35, 0
      %p104 = por %p102, %p103
      %s105 = ssub.s32 %s36, %s48
      %s106 = ssub.s32 %s37, %s44
      %s107 = sor.u32 %s105, %s106
      %p108 = scmp.eq.s32.totalorder %s107, 0
      %s110 = sadd.s32 %s109, 1
      %s111 = scalar_select %p108, %s109, %s110
      %p114 = pneg %p108
      %p115 = scmp.eq.s32.totalorder %s29, 1
      %p116 = por %p114, %p115
      %p117 = scmp.ne.s32.totalorder %s109, %s112
      %p118 = scmp.eq.s32.totalorder %s29, 0
      %p119 = por %p117, %p118
      %p120 = scmp.ne.s32.totalorder %s109, %s112
      %p121 = scmp.eq.s32.totalorder %s34, 1
      %p122 = por %p120, %p121
      %p123 = scmp.ne.s32.totalorder %s112, %s113
      %p124 = scmp.eq.s32.totalorder %s34, 0
      %p125 = por %p123, %p124
      %p126 = scmp.ne.s32.totalorder %s112, %s113
      %p127 = scmp.eq.s32.totalorder %s35, 1
      %p128 = por %p126, %p127
      %p130 = scmp.ne.s32.totalorder %s113, %s129
      %p131 = scmp.eq.s32.totalorder %s35, 0
      %p132 = por %p130, %p131
      %s133 = ssub.s32 %s36, %s48
      %s134 = ssub.s32 %s37, %s44
      %s135 = sor.u32 %s133, %s134
      %p136 = scmp.eq.s32.totalorder %s135, 0
      %s138 = sadd.s32 %s137, 1
      %s139 = scalar_select %p136, %s137, %s138
      %p142 = pneg %p136
      %p143 = scmp.eq.s32.totalorder %s29, 1
      %p144 = por %p142, %p143
      %p145 = scmp.ne.s32.totalorder %s137, %s140
      %p146 = scmp.eq.s32.totalorder %s29, 0
      %p147 = por %p145, %p146
      %p148 = scmp.ne.s32.totalorder %s137, %s140
      %p149 = scmp.eq.s32.totalorder %s34, 1
      %p150 = por %p148, %p149
      %p151 = scmp.ne.s32.totalorder %s140, %s141
      %p152 = scmp.eq.s32.totalorder %s34, 0
      %p153 = por %p151, %p152
      %p154 = scmp.ne.s32.totalorder %s140, %s141
      %p155 = scmp.eq.s32.totalorder %s35, 1
      %p156 = por %p154, %p155
      %p158 = scmp.ne.s32.totalorder %s141, %s157
      %p159 = scmp.eq.s32.totalorder %s35, 0
      %p160 = por %p158, %p159
      %s161 = ssub.s32 %s36, %s48
      %s162 = ssub.s32 %s37, %s44
      %s163 = sor.u32 %s161, %s162
      %p164 = scmp.eq.s32.totalorder %s163, 0
      %s166 = sadd.s32 %s165, 1
      %s167 = scalar_select %p164, %s165, %s166
      %p170 = pneg %p164
      %p171 = scmp.eq.s32.totalorder %s29, 1
      %p172 = por %p170, %p171
      %p173 = scmp.ne.s32.totalorder %s165, %s168
      %p174 = scmp.eq.s32.totalorder %s29, 0
      %p175 = por %p173, %p174
      %p176 = scmp.ne.s32.totalorder %s165, %s168
      %p177 = scmp.eq.s32.totalorder %s34, 1
      %p178 = por %p176, %p177
      %p179 = scmp.ne.s32.totalorder %s168, %s169
      %p180 = scmp.eq.s32.totalorder %s34, 0
      %p181 = por %p179, %p180
      %p182 = scmp.ne.s32.totalorder %s168, %s169
      %p183 = scmp.eq.s32.totalorder %s35, 1
      %p184 = por %p182, %p183
      %p186 = scmp.ne.s32.totalorder %s169, %s185
      %p187 = scmp.eq.s32.totalorder %s35, 0
      %p188 = por %p186, %p187
      %s189 = ssub.s32 %s36, %s48
      %s190 = ssub.s32 %s37, %s44
      %s191 = sor.u32 %s189, %s190
      %p192 = scmp.eq.s32.totalorder %s191, 0
      %s194 = sadd.s32 %s193, 1
      %s195 = scalar_select %p192, %s193, %s194
      %p198 = pneg %p192
      %p199 = scmp.eq.s32.totalorder %s29, 1
      %p200 = por %p198, %p199
      %p201 = scmp.ne.s32.totalorder %s193, %s196
      %p202 = scmp.eq.s32.totalorder %s29, 0
      %p203 = por %p201, %p202
      %p204 = scmp.ne.s32.totalorder %s193, %s196
      %p205 = scmp.eq.s32.totalorder %s34, 1
      %p206 = por %p204, %p205
      %p207 = scmp.ne.s32.totalorder %s196, %s197
      %p208 = scmp.eq.s32.totalorder %s34, 0
      %p209 = por %p207, %p208
      %p210 = scmp.ne.s32.totalorder %s196, %s197
      %p211 = scmp.eq.s32.totalorder %s35, 1
      %p212 = por %p210, %p211
      %p214 = scmp.ne.s32.totalorder %s197, %s213
      %p215 = scmp.eq.s32.totalorder %s35, 0
      %p216 = por %p214, %p215
      %s217 = ssub.s32 %s36, %s48
      %s218 = ssub.s32 %s37, %s44
      %s219 = sor.u32 %s217, %s218
      %p220 = scmp.eq.s32.totalorder %s219, 0
      %s222 = sadd.s32 %s221, 1
      %s223 = scalar_select %p220, %s221, %s222
      %p226 = pneg %p220
      %p227 = scmp.eq.s32.totalorder %s29, 1
      %p228 = por %p226, %p227
      %p229 = scmp.ne.s32.totalorder %s221, %s224
      %p230 = scmp.eq.s32.totalorder %s29, 0
      %p231 = por %p229, %p230
      %p232 = scmp.ne.s32.totalorder %s221, %s224
      %p233 = scmp.eq.s32.totalorder %s34, 1
      %p234 = por %p232, %p233
      %p235 = scmp.ne.s32.totalorder %s224, %s225
      %p236 = scmp.eq.s32.totalorder %s34, 0
      %p237 = por %p235, %p236
      %p238 = scmp.ne.s32.totalorder %s224, %s225
      %p239 = scmp.eq.s32.totalorder %s35, 1
      %p240 = por %p238, %p239
      %p242 = scmp.ne.s32.totalorder %s225, %s241
      %p243 = scmp.eq.s32.totalorder %s35, 0
      %p244 = por %p242, %p243
      %s245 = ssub.s32 %s36, %s48
      %s246 = ssub.s32 %s37, %s44
      %s247 = sor.u32 %s245, %s246
      %p248 = scmp.eq.s32.totalorder %s247, 0
      %s250 = sadd.s32 %s249, 1
      %s251 = scalar_select %p248, %s249, %s250
      %p254 = pneg %p248
      %p255 = scmp.eq.s32.totalorder %s29, 1
      %p256 = por %p254, %p255
      %p257 = scmp.ne.s32.totalorder %s249, %s252
      %p258 = scmp.eq.s32.totalorder %s29, 0
      %p259 = por %p257, %p258
      %p260 = scmp.ne.s32.totalorder %s249, %s252
      %p261 = scmp.eq.s32.totalorder %s34, 1
      %p262 = por %p260, %p261
      %p263 = scmp.ne.s32.totalorder %s252, %s253
      %p264 = scmp.eq.s32.totalorder %s34, 0
      %p265 = por %p263, %p264
      %p266 = scmp.ne.s32.totalorder %s252, %s253
      %p267 = scmp.eq.s32.totalorder %s35, 1
      %p268 = por %p266, %p267
      %p270 = scmp.ne.s32.totalorder %s253, %s269
      %p271 = scmp.eq.s32.totalorder %s35, 0
      %p272 = por %p270, %p271
      %p273 = scmp.le.s32.totalorder 1, %s29
      %p274 = scmp.lt.s32.totalorder %s29, 3
      %p275 = pnand %p273, %p274
      %p276 = pneg %p275
      // Predicated region
      $region9: #{tpu_custom_call.1} parent=5 // pred_check
        _
      $region10: #{tpu_custom_call.1} parent=5 // pred_check_branch
        %278 = sbr.rel (%p275) target = $region12
      $region11: #{tpu_custom_call.1} parent=5 // pred_region
        %s279 = ssub.s32 %s29, 1
      $region12: #{tpu_custom_call.1} parent=5 // pred_fallthru
        _
      %p280 = scmp.lt.s32.totalorder %s29, 2
      // Predicated region
      $region13: #{tpu_custom_call.1} parent=5 // pred_check
        %p281 = pneg %p280
      $region14: #{tpu_custom_call.1} parent=5 // pred_check_branch
        %283 = sbr.rel (%p281) target = $region16
      $region15: #{tpu_custom_call.1} parent=5 // pred_region
        // Predicated region
        $region17: #{tpu_custom_call.1} parent=15 // pred_check
          %p284 = pneg %p63
        $region18: #{tpu_custom_call.1} parent=15 // pred_check_branch
          %286 = sbr.rel (%p284) target = $region20
        $region19: #{tpu_custom_call.1} parent=15 // pred_region
          %s287 = sand.u32 %s53, 1
          %s288 = scalar_lea.sflag [#allocation3], %s287
          %s289 = sand.u32 %s53, 1
          %s290 = smul.addr %s289, 4
          %s291 = scalar_lea.vmem [#allocation2], %s290
          %293 = vsyncadd %s288, 0
          %s294 = sadd.s32 %s37, %s36
          %s295 = smul.addr %s294, 4
          %s296 = scalar_lea.hbm %s0, %s295
          %s298 = sshll.u32 %s296, 4
          %s299 = int_to_ptr.hbm [resolvable:$true] %s298
          %s300 = sshll.u32 %s291, 4
          %s301 = int_to_ptr.vmem [resolvable:$true] %s300
          %303 = dma.hbm_to_vmem [thread:$0]  %s299, 64, %s301, %s288
        $region20: #{tpu_custom_call.1} parent=15 // pred_fallthru
          _
        // Predicated region
        $region21: #{tpu_custom_call.1} parent=15 // pred_check
          %p304 = pneg %p91
        $region22: #{tpu_custom_call.1} parent=15 // pred_check_branch
          %306 = sbr.rel (%p304) target = $region24
        $region23: #{tpu_custom_call.1} parent=15 // pred_region
          %s307 = sand.u32 %s29, 1
          %s308 = scalar_lea.sflag [#allocation6], %s307
          %s309 = sand.u32 %s81, 1
          %s310 = smul.addr %s309, 8
          %s311 = scalar_lea.vmem [#allocation5], %s310
          %313 = vsyncadd %s308, 0
          %s314 = sadd.s32 %s37, %s36
          %s315 = smul.addr %s314, 8
          %s316 = scalar_lea.hbm %s1, %s315
          %s318 = sshll.u32 %s316, 4
          %s319 = int_to_ptr.hbm [resolvable:$true] %s318
          %s320 = sshll.u32 %s311, 4
          %s321 = int_to_ptr.vmem [resolvable:$true] %s320
          %323 = dma.hbm_to_vmem [thread:$0]  %s319, 128, %s321, %s308
        $region24: #{tpu_custom_call.1} parent=15 // pred_fallthru
          _
        // Predicated region
        $region25: #{tpu_custom_call.1} parent=15 // pred_check
          %p324 = pneg %p119
        $region26: #{tpu_custom_call.1} parent=15 // pred_check_branch
          %326 = sbr.rel (%p324) target = $region28
        $region27: #{tpu_custom_call.1} parent=15 // pred_region
          %s327 = sand.u32 %s29, 1
          %s328 = scalar_lea.sflag [#allocation6], %s327
          %s329 = sand.u32 %s109, 1
          %s330 = scalar_lea.vmem [#allocation7], %s329
          %332 = vsyncadd %s328, 0
          %s333 = sadd.s32 %s37, %s36
          %s334 = scalar_lea.hbm %s2, %s333
          %s336 = sshll.u32 %s334, 4
          %s337 = int_to_ptr.hbm [resolvable:$true] %s336
          %s338 = sshll.u32 %s330, 4
          %s339 = int_to_ptr.vmem [resolvable:$true] %s338
          %341 = dma.hbm_to_vmem [thread:$0]  %s337, 16, %s339, %s328
        $region28: #{tpu_custom_call.1} parent=15 // pred_fallthru
          _
        // Predicated region
        $region29: #{tpu_custom_call.1} parent=15 // pred_check
          %p342 = pneg %p147
        $region30: #{tpu_custom_call.1} parent=15 // pred_check_branch
          %344 = sbr.rel (%p342) target = $region32
        $region31: #{tpu_custom_call.1} parent=15 // pred_region
          %s345 = sand.u32 %s137, 1
          %s346 = scalar_lea.sflag [#allocation9], %s345
          %s347 = sand.u32 %s137, 1
          %s348 = smul.addr %s347, 4
          %s349 = scalar_lea.vmem [#allocation8], %s348
          %351 = vsyncadd %s346, 0
          %s352 = sadd.s32 %s37, %s36
          %s353 = smul.addr %s352, 4
          %s354 = scalar_lea.hbm %s3, %s353
          %s356 = sshll.u32 %s354, 4
          %s357 = int_to_ptr.hbm [resolvable:$true] %s356
          %s358 = sshll.u32 %s349, 4
          %s359 = int_to_ptr.vmem [resolvable:$true] %s358
          %361 = dma.hbm_to_vmem [thread:$0]  %s357, 64, %s359, %s346
        $region32: #{tpu_custom_call.1} parent=15 // pred_fallthru
          _
        // Predicated region
        $region33: #{tpu_custom_call.1} parent=15 // pred_check
          %p362 = pneg %p175
        $region34: #{tpu_custom_call.1} parent=15 // pred_check_branch
          %364 = sbr.rel (%p362) target = $region36
        $region35: #{tpu_custom_call.1} parent=15 // pred_region
          %p365 = scmp.lt.s32.totalorder %s36, 1
          %s366 = scalar_select %p365, %s36, 1
          %p367 = scmp.lt.s32.totalorder %s37, 0
          %s368 = scalar_select %p367, %s37, 0
          %s369 = sadd.s32 %s368, %s366
          %s370 = scalar_lea.vmem %s4, %s369
        $region36: #{tpu_custom_call.1} parent=15 // pred_fallthru
          _
        // Predicated region
        $region37: #{tpu_custom_call.1} parent=15 // pred_check
          %p371 = pneg %p203
        $region38: #{tpu_custom_call.1} parent=15 // pred_check_branch
          %373 = sbr.rel (%p371) target = $region40
        $region39: #{tpu_custom_call.1} parent=15 // pred_region
          %p374 = scmp.lt.s32.totalorder %s36, 1
          %s375 = scalar_select %p374, %s36, 1
          %p376 = scmp.lt.s32.totalorder %s37, 0
          %s377 = scalar_select %p376, %s37, 0
          %s378 = sadd.s32 %s377, %s375
          %s379 = scalar_lea.vmem %s5, %s378
        $region40: #{tpu_custom_call.1} parent=15 // pred_fallthru
          _
      $region16: #{tpu_custom_call.1} parent=5 // pred_fallthru
        _
      %p380 = scmp.le.s32.totalorder 1, %s29
      %p381 = scmp.lt.s32.totalorder %s29, 3
      %p382 = pnand %p380, %p381
      %p383 = pneg %p382
      // Predicated region
      $region41: #{tpu_custom_call.1} parent=5 // pred_check
        _
      $region42: #{tpu_custom_call.1} parent=5 // pred_check_branch
        %385 = sbr.rel (%p382) target = $region44
      $region43: #{tpu_custom_call.1} parent=5 // pred_region
        %s386 = ssub.s32 %s29, 1
        %s387 = sand.u32 %s56, 1
        %s388 = scalar_lea.sflag [#allocation3], %s387
        %s389 = sand.u32 %s56, 1
        %s390 = smul.addr %s389, 4
        %s391 = scalar_lea.vmem [#allocation2], %s390
        // Predicated region
        $region45: #{tpu_custom_call.1} parent=43 // pred_check
          %p392 = pneg %p69
        $region46: #{tpu_custom_call.1} parent=43 // pred_check_branch
          %394 = sbr.rel (%p392) target = $region48
        $region47: #{tpu_custom_call.1} parent=43 // pred_region
          %396 = dma.done %s388, 64
        $region48: #{tpu_custom_call.1} parent=43 // pred_fallthru
          _
        %s397 = sand.u32 %s34, 1
        %s398 = scalar_lea.sflag [#allocation6], %s397
        %s399 = sand.u32 %s84, 1
        %s400 = smul.addr %s399, 8
        %s401 = scalar_lea.vmem [#allocation5], %s400
        // Predicated region
        $region49: #{tpu_custom_call.1} parent=43 // pred_check
          %p402 = pneg %p97
        $region50: #{tpu_custom_call.1} parent=43 // pred_check_branch
          %404 = sbr.rel (%p402) target = $region52
        $region51: #{tpu_custom_call.1} parent=43 // pred_region
          %406 = dma.done %s398, 128
        $region52: #{tpu_custom_call.1} parent=43 // pred_fallthru
          _
        %s407 = sand.u32 %s34, 1
        %s408 = scalar_lea.sflag [#allocation6], %s407
        %s409 = sand.u32 %s112, 1
        %s410 = scalar_lea.vmem [#allocation7], %s409
        // Predicated region
        $region53: #{tpu_custom_call.1} parent=43 // pred_check
          %p411 = pneg %p125
        $region54: #{tpu_custom_call.1} parent=43 // pred_check_branch
          %413 = sbr.rel (%p411) target = $region56
        $region55: #{tpu_custom_call.1} parent=43 // pred_region
          %415 = dma.done %s408, 16
        $region56: #{tpu_custom_call.1} parent=43 // pred_fallthru
          _
        %s416 = sand.u32 %s140, 1
        %s417 = scalar_lea.sflag [#allocation9], %s416
        %s418 = sand.u32 %s140, 1
        %s419 = smul.addr %s418, 4
        %s420 = scalar_lea.vmem [#allocation8], %s419
        // Predicated region
        $region57: #{tpu_custom_call.1} parent=43 // pred_check
          %p421 = pneg %p153
        $region58: #{tpu_custom_call.1} parent=43 // pred_check_branch
          %423 = sbr.rel (%p421) target = $region60
        $region59: #{tpu_custom_call.1} parent=43 // pred_region
          %425 = dma.done %s417, 64
        $region60: #{tpu_custom_call.1} parent=43 // pred_fallthru
          _
        %s426 = sand.u32 %s56, 1
        %s427 = scalar_lea.sflag [#allocation3], %s426
        %s428 = sand.u32 %s56, 1
        %s429 = smul.addr %s428, 4
        %s430 = scalar_lea.vmem [#allocation2], %s429
        %p431 = pneg %p69
        %p432 = pneg %p66
        %s433 = sand.u32 %s34, 1
        %s434 = scalar_lea.sflag [#allocation6], %s433
        %s435 = sand.u32 %s84, 1
        %s436 = smul.addr %s435, 8
        %s437 = scalar_lea.vmem [#allocation5], %s436
        %p438 = pneg %p97
        %p439 = pneg %p94
        %s440 = sand.u32 %s34, 1
        %s441 = scalar_lea.sflag [#allocation6], %s440
        %s442 = sand.u32 %s112, 1
        %s443 = scalar_lea.vmem [#allocation7], %s442
        %p444 = pneg %p125
        %p445 = pneg %p122
        %s446 = sand.u32 %s140, 1
        %s447 = scalar_lea.sflag [#allocation9], %s446
        %s448 = sand.u32 %s140, 1
        %s449 = smul.addr %s448, 4
        %s450 = scalar_lea.vmem [#allocation8], %s449
        %p451 = pneg %p153
        %p452 = pneg %p150
        %p453 = scmp.lt.s32.totalorder %s38, 1
        %s454 = scalar_select %p453, %s38, 1
        %p455 = scmp.lt.s32.totalorder %s39, 0
        %s456 = scalar_select %p455, %s39, 0
        %s457 = sadd.s32 %s456, %s454
        %s458 = scalar_lea.vmem %s4, %s457
        %p459 = pneg %p181
        %p460 = pneg %p178
        %p461 = scmp.lt.s32.totalorder %s38, 1
        %s462 = scalar_select %p461, %s38, 1
        %p463 = scmp.lt.s32.totalorder %s39, 0
        %s464 = scalar_select %p463, %s39, 0
        %s465 = sadd.s32 %s464, %s462
        %s466 = scalar_lea.vmem %s5, %s465
        %p467 = pneg %p209
        %p468 = pneg %p206
        %p469 = pneg %p237
        %p470 = pneg %p234
        %s471 = sand.u32 %s224, 1
        %s472 = scalar_lea.sflag [#allocation4], %s471
        %s473 = sand.u32 %s224, 1
        %s474 = scalar_lea.vmem [#allocation10], %s473
        %p475 = pneg %p265
        %p476 = pneg %p262
        %s477 = sand.u32 %s252, 1
        %s478 = scalar_lea.sflag [#allocation12], %s477
        %s479 = sand.u32 %s252, 1
        %s480 = scalar_lea.vmem [#allocation11], %s479
        %p481 = scmp.lt.s32.totalorder %s38, 1
        %s482 = scalar_select %p481, %s38, 1
        %p483 = scmp.lt.s32.totalorder %s39, 0
        %s484 = scalar_select %p483, %s39, 0
        %s485 = sadd.s32 %s484, %s482
        %s486 = scalar_lea.vmem %s4, %s485
        %p487 = scmp.lt.s32.totalorder %s38, 1
        %s488 = scalar_select %p487, %s38, 1
        %p489 = scmp.lt.s32.totalorder %s39, 0
        %s490 = scalar_select %p489, %s39, 0
        %s491 = sadd.s32 %s490, %s488
        %s492 = scalar_lea.vmem %s5, %s491
        %v493 = vld [vmem:[%s391] sm:$0xf]
        %v494 = vld [vmem:[%s420] sm:$0xf]
        %v495 = vld [vmem:[%s486] sm:$0x1]
        %v496 = vld [vmem:[%s492] sm:$0x1]
        %v497 = vld [vmem:[%s410] sm:$0x1]
        %v498 = vld [vmem:[%s401] sm:$0xff]
        %v499 = vsub.f32 %v493, %v494
        %v500 = vand.u32 2147483647, %v499
        %vm501 = vcmp.lt.f32.partialorder %v500, 1.0
        %v502 = vmul.f32 %v499, 0.5
        %v503 = vmul.f32 %v502, %v499
        %v504 = vsub.f32 %v500, 0.5
        %v505 = vsel %vm501, %v503, %v504
        %vm506 = vcmask 1043456
        %v507 = vsel %vm506, %v505, 0.0
        %v508 = vrot.slane %v507, 4
        %v509 = vadd.f32 %v507, %v508
        %v510 = vrot.slane %v509, 2
        %v511 = vadd.f32 %v509, %v510
        %v512 = vrot.slane %v511, 1
        %v513 = vadd.f32 %v511, %v512
        %v514 = vmul.f32 %v513, %v496
        %v515 = vmul.f32 %v514, %v495
        %v516 = vrot.slane %v498, 4
        %v517 = vmax.f32 %v498, %v516
        %v518 = vrot.slane %v517, 2
        %v519 = vmax.f32 %v517, %v518
        %v520 = vrot.slane %v519, 1
        %v521 = vmax.f32 %v519, %v520
        %v522 = vsub.f32 %v498, %v521
        %v523 = vmul.f32 %v522, 1.442695
        %v524 = vpow.pop %v523
        %v525 = vrot.slane %v524, 4
        %v526 = vadd.f32 %v524, %v525
        %v527 = vrot.slane %v526, 2
        %v528 = vadd.f32 %v526, %v527
        %v529 = vrot.slane %v528, 1
        %v530 = vadd.f32 %v528, %v529
        %v531 = vlog2.pop %v530
        %v532 = vmul.f32 %v531, 0.6931472
        %v533 = vlaneseq
        %v534 = vshrl.u32 %v533, 7
        %v535 = vperm.slane %v497, 0
        %vm536 = vcmp.eq.s32.totalorder %v534, %v535
        %v537 = vsel %vm536, %v498, 0.0
        %v538 = vrot.slane %v537, 4
        %v539 = vadd.f32 %v537, %v538
        %v540 = vrot.slane %v539, 2
        %v541 = vadd.f32 %v539, %v540
        %v542 = vrot.slane %v541, 1
        %v543 = vadd.f32 %v541, %v542
        %v544 = vadd.f32 %v521, %v532
        %v545 = vsub.f32 %v544, %v543
        %546 = vst [vmem:[%s474] sm:$0x1] %v545
        %547 = vst [vmem:[%s480] sm:$0x1] %v515
        %s548 = sand.u32 %s224, 1
        %s549 = scalar_lea.sflag [#allocation4], %s548
        %s550 = sand.u32 %s224, 1
        %s551 = scalar_lea.vmem [#allocation10], %s550
        %s552 = sand.u32 %s252, 1
        %s553 = scalar_lea.sflag [#allocation12], %s552
        %s554 = sand.u32 %s252, 1
        %s555 = scalar_lea.vmem [#allocation11], %s554
        // Predicated region
        $region61: #{tpu_custom_call.1} parent=43 // pred_check
          %p556 = pneg %p234
        $region62: #{tpu_custom_call.1} parent=43 // pred_check_branch
          %558 = sbr.rel (%p556) target = $region64
        $region63: #{tpu_custom_call.1} parent=43 // pred_region
          %560 = vsyncadd %s549, 0
          %s561 = sadd.s32 %s39, %s38
          %s562 = scalar_lea.hbm %s6, %s561
          %s564 = sshll.u32 %s551, 4
          %s565 = int_to_ptr.vmem [resolvable:$true] %s564
          %s566 = sshll.u32 %s562, 4
          %s567 = int_to_ptr.hbm [resolvable:$true] %s566
          %569 = dma.vmem_to_hbm [thread:$0]  %s565, 16, %s567, %s549
        $region64: #{tpu_custom_call.1} parent=43 // pred_fallthru
          _
        // Predicated region
        $region65: #{tpu_custom_call.1} parent=43 // pred_check
          %p570 = pneg %p262
        $region66: #{tpu_custom_call.1} parent=43 // pred_check_branch
          %572 = sbr.rel (%p570) target = $region68
        $region67: #{tpu_custom_call.1} parent=43 // pred_region
          %574 = vsyncadd %s553, 0
          %s575 = sadd.s32 %s39, %s38
          %s576 = scalar_lea.hbm %s7, %s575
          %s578 = sshll.u32 %s555, 4
          %s579 = int_to_ptr.vmem [resolvable:$true] %s578
          %s580 = sshll.u32 %s576, 4
          %s581 = int_to_ptr.hbm [resolvable:$true] %s580
          %583 = dma.vmem_to_hbm [thread:$0]  %s579, 16, %s581, %s553
        $region68: #{tpu_custom_call.1} parent=43 // pred_fallthru
          _
      $region44: #{tpu_custom_call.1} parent=5 // pred_fallthru
        _
      %p584 = scmp.le.s32.totalorder 2, %s29
      // Predicated region
      $region69: #{tpu_custom_call.1} parent=5 // pred_check
        %p585 = pneg %p584
      $region70: #{tpu_custom_call.1} parent=5 // pred_check_branch
        %587 = sbr.rel (%p585) target = $region72
      $region71: #{tpu_custom_call.1} parent=5 // pred_region
        %s588 = ssub.s32 %s29, 2
        // Predicated region
        $region73: #{tpu_custom_call.1} parent=71 // pred_check
          %p589 = pneg %p240
        $region74: #{tpu_custom_call.1} parent=71 // pred_check_branch
          %591 = sbr.rel (%p589) target = $region76
        $region75: #{tpu_custom_call.1} parent=71 // pred_region
          %s592 = sand.u32 %s225, 1
          %s593 = scalar_lea.sflag [#allocation4], %s592
          %s594 = sand.u32 %s225, 1
          %s595 = scalar_lea.vmem [#allocation10], %s594
          %597 = dma.done %s593, 16
        $region76: #{tpu_custom_call.1} parent=71 // pred_fallthru
          _
        // Predicated region
        $region77: #{tpu_custom_call.1} parent=71 // pred_check
          %p598 = pneg %p268
        $region78: #{tpu_custom_call.1} parent=71 // pred_check_branch
          %600 = sbr.rel (%p598) target = $region80
        $region79: #{tpu_custom_call.1} parent=71 // pred_region
          %s601 = sand.u32 %s253, 1
          %s602 = scalar_lea.sflag [#allocation12], %s601
          %s603 = sand.u32 %s253, 1
          %s604 = scalar_lea.vmem [#allocation11], %s603
          %606 = dma.done %s602, 16
        $region80: #{tpu_custom_call.1} parent=71 // pred_fallthru
          _
      $region72: #{tpu_custom_call.1} parent=5 // pred_fallthru
        _
    $region6: #{tpu_custom_call.1} parent=1 // loop_footer
      %s33 = sadd.s32 1, %s29
    $region7: #{tpu_custom_call.1} parent=1 // loop_footer_branch
      %28 = sbr.rel target = $region3
    $region8: #{tpu_custom_call.1} parent=1 // loop_exit
      _
    %607 = vsyncpa [#allocation3], 1
    %s608 = scalar_lea.sflag [#allocation3], 1
    %609 = vsyncpa %s608, 1
    %610 = vsyncpa [#allocation6], 1
    %s611 = scalar_lea.sflag [#allocation6], 1
    %612 = vsyncpa %s611, 1
    %613 = vsyncpa [#allocation9], 1
    %s614 = scalar_lea.sflag [#allocation9], 1
    %615 = vsyncpa %s614, 1
    %616 = vsyncpa [#allocation4], 1
    %s617 = scalar_lea.sflag [#allocation4], 1
    %618 = vsyncpa %s617, 1
    %619 = vsyncpa [#allocation12], 1
    %s620 = scalar_lea.sflag [#allocation12], 1
    %621 = vsyncpa %s620, 1

</llo_original>
